<compile_context>
chip_gen: v5e
topology: v5e:2x2
jax: 0.10.0
libtpu: 0.0.40
codegen_flags: <defaults>
</compile_context>

<pallas_src>
import jax
import jax.numpy as jnp
from jax.experimental import pallas as pl
from jax.experimental.pallas import tpu as pltpu


def _detect_action_kernel(img_ref, heat_ref, wt_ref, bt_ref, out_ref, acc_ref):
    # img_ref : (FPB, C, H*W)     heat_ref: (FPB, J, Hh*Ww)
    # wt_ref  : (classNum, C+J)   bt_ref  : (classNum, 1)
    # out_ref : (classNum, 1)     acc_ref : (C+J, 1) scratch (running sums)
    t = pl.program_id(0)
    fpb, C, _ = img_ref.shape
    J = heat_ref.shape[1]

    @pl.when(t == 0)
    def _init():
        acc_ref[...] = jnp.zeros_like(acc_ref)

    # Per-channel / per-joint spatial sums for this block of frames.
    # Lane-axis reduce -> VPU adds (+ one XLU finisher), hidden under DMA.
    s_img = jnp.sum(img_ref[0], axis=-1, keepdims=True)       # (C, 1)
    s_heat = jnp.sum(heat_ref[0], axis=-1, keepdims=True)     # (J, 1)
    for i in range(1, fpb):  # static unroll over frames in this block
        s_img = s_img + jnp.sum(img_ref[i], axis=-1, keepdims=True)
        s_heat = s_heat + jnp.sum(heat_ref[i], axis=-1, keepdims=True)

    acc_ref[0:C, :] = acc_ref[0:C, :] + s_img
    acc_ref[C:C + J, :] = acc_ref[C:C + J, :] + s_heat

    @pl.when(t == pl.num_programs(0) - 1)
    def _finalize():
        # Single fused head: label^T = Wt @ pooled_sums + bt  (scales folded).
        out_ref[...] = (
            jnp.dot(wt_ref[...], acc_ref[...],
                    preferred_element_type=jnp.float32)
            + bt_ref[...])


def detect_action_forward(x, alpha, heatmaps, skeleton, nframe, params,
                          frames_per_block=None):
    """JAX/Pallas equivalent of detectAction.forward.

    x        : (T, C, H, W)       float32 video frames
    heatmaps : (1, T, J, Hh, Ww)  float32 joint heatmaps
    alpha, skeleton : unused by the reference forward (signature parity)
    nframe   : static python int (FRA)
    """
    del alpha, skeleton  # unused in the reference forward as well
    FRA = int(nframe)
    T = x.shape[0]
    assert T >= FRA, f"clip has {T} frames but FRA={FRA}"
    assert heatmaps.shape[1] >= FRA, "heatmaps have fewer frames than FRA"

    # keyInd = linspace(0, FRA-1, FRA) == arange(FRA)  ->  a prefix slice.
    keyImage = x[:FRA]                 # (FRA, C, H, W)
    keyHeatmaps = heatmaps[0, :FRA]    # (FRA, J, Hh, Ww)

    _, C, H, W = keyImage.shape
    _, J, Hh, Ww = keyHeatmaps.shape
    HW, HhWw = H * W, Hh * Ww

    # Lane-dense layout: pure reshape of contiguous NCHW data, no transpose.
    img3d = keyImage.reshape(FRA, C, HW).astype(jnp.float32)
    heat3d = keyHeatmaps.reshape(FRA, J, HhWw).astype(jnp.float32)

    w_i3d, b_i3d, w_heat, b_heat = params
    class_num = w_i3d.shape[1]

    # Fused, transposed head: label^T = Wt @ [sum_img; sum_heat] + bt.
    # 0.5/0.5 mix and mean normalisation are folded into Wt / bt.
    wt = jnp.concatenate(
        [(0.5 / (FRA * HW)) * w_i3d.T,          # (classNum, C)
         (0.5 / (FRA * HhWw)) * w_heat.T],      # (classNum, J)
        axis=1).astype(jnp.float32)             # (classNum, C+J)
    bt = (0.5 * (b_i3d + b_heat)).reshape(class_num, 1).astype(jnp.float32)

    # Pick frames-per-block: largest divisor of FRA whose double-buffered
    # input blocks stay within a small VMEM budget (v7x has 64 MiB physical).
    if frames_per_block is None:
        bytes_per_frame = 4 * (C * HW + J * HhWw)
        budget = 8 * 1024 * 1024
        frames_per_block = 1
        for d in range(1, FRA + 1):
            if FRA % d == 0 and 2 * d * bytes_per_frame <= budget:
                frames_per_block = d
    fpb = int(frames_per_block)
    assert FRA % fpb == 0, "frames_per_block must divide FRA"
    grid = (FRA // fpb,)

    out_col = pl.pallas_call(
        _detect_action_kernel,
        out_shape=jax.ShapeDtypeStruct((class_num, 1), jnp.float32),
        grid_spec=pltpu.PrefetchScalarGridSpec(
            num_scalar_prefetch=0,
            grid=grid,
            in_specs=[
                pl.BlockSpec((fpb, C, HW), lambda t: (t, 0, 0)),
                pl.BlockSpec((fpb, J, HhWw), lambda t: (t, 0, 0)),
                pl.BlockSpec((class_num, C + J), lambda t: (0, 0)),
                pl.BlockSpec((class_num, 1), lambda t: (0, 0)),
            ],
            out_specs=pl.BlockSpec((class_num, 1), lambda t: (0, 0)),
            scratch_shapes=[pltpu.VMEM((C + J, 1), jnp.float32)],
        ),
        compiler_params=pltpu.CompilerParams(
            dimension_semantics=("arbitrary",),      # frame axis = reduction
            vmem_limit_bytes=32 * 1024 * 1024,       # fits v5e/v6e/v7x
        ),
    )(img3d, heat3d, wt, bt)

    # (classNum, 1) -> (1, classNum): same element order, host-side reshape.
    label = out_col.reshape(1, class_num)
    return label, FRA


def make_params(key, C, J, class_num):
    k1, k2, k3, k4 = jax.random.split(key, 4)
    w_i3d = 0.1 * jax.random.normal(k1, (C, class_num), jnp.float32)
    b_i3d = 0.1 * jax.random.normal(k2, (1, class_num), jnp.float32)
    w_heat = 0.1 * jax.random.normal(k3, (J, class_num), jnp.float32)
    b_heat = 0.1 * jax.random.normal(k4, (1, class_num), jnp.float32)
    return (w_i3d, b_i3d, w_heat, b_heat)


def _reference_forward(x, heatmaps, nframe, params):
    """Pure-JAX reference of the stand-in two-stream forward."""
    FRA = int(nframe)
    keyImage = x[:FRA].astype(jnp.float32)
    keyHeat = heatmaps[0, :FRA].astype(jnp.float32)
    w_i3d, b_i3d, w_heat, b_heat = params
    pooled_img = jnp.mean(keyImage, axis=(0, 2, 3))[None, :]     # (1, C)
    pooled_heat = jnp.mean(keyHeat, axis=(0, 2, 3))[None, :]     # (1, J)
    label_i3d = pooled_img @ w_i3d + b_i3d
    label_heat = pooled_heat @ w_heat + b_heat
    return 0.5 * label_i3d + 0.5 * label_heat


if __name__ == "__main__":
    key = jax.random.PRNGKey(0)
    kx, kh, ka, ks, kp = jax.random.split(key, 5)

    T, C, H, W = 8, 3, 16, 16       # video frames (NCHW per frame)
    J, Hh, Ww = 4, 16, 16           # joint heatmaps
    class_num = 10
    nframe = 6                      # FRA

    x = jax.random.normal(kx, (T, C, H, W), jnp.float32)
    heatmaps = jax.random.normal(kh, (1, T, J, Hh, Ww), jnp.float32)
    alpha = jax.random.normal(ka, (1,), jnp.float32)           # unused
    skeleton = jax.random.normal(ks, (T, J, 2), jnp.float32)   # unused

    params = make_params(kp, C, J, class_num)

    # frames_per_block=2 -> 3 grid steps: exercises the accumulator pipeline.
    label, fra = detect_action_forward(x, alpha, heatmaps, skeleton, nframe,
                                       params, frames_per_block=2)
    label = jax.block_until_ready(label)

    ref = _reference_forward(x, heatmaps, nframe, params)
    assert label.shape == (1, class_num)
    assert label.dtype == jnp.float32
    assert fra == nframe
    assert jnp.allclose(label, ref, rtol=1e-4, atol=1e-5), (label, ref)
    print("KERNEL_OK")
</pallas_src>

<mosaic_0001>
module attributes {stable_mosaic.version = 11 : i64} {
  func.func @_detect_action_kernel(%arg0: i32, %arg1: memref<2x3x256xf32, #tpu.memory_space<vmem>>, %arg2: memref<2x4x256xf32, #tpu.memory_space<vmem>>, %arg3: memref<10x7xf32, #tpu.memory_space<vmem>>, %arg4: memref<10x1xf32, #tpu.memory_space<vmem>>, %arg5: memref<10x1xf32, #tpu.memory_space<vmem>>, %arg6: memref<7x1xf32, #tpu.memory_space<vmem>>) attributes {dimension_semantics = [#tpu.dimension_semantics<arbitrary>], iteration_bounds = array<i64: 3>, scalar_prefetch = 0 : i64, scratch_operands = 1 : i64, tpu.core_type = #tpu.core_type<tc>, window_params = [{transform_indices = @transform_0, window_bounds = array<i64: 2, 3, 256>}, {transform_indices = @transform_1, window_bounds = array<i64: 2, 4, 256>}, {pipeline_mode = #tpu.pipeline_mode<synchronous>, transform_indices = @transform_2, window_bounds = array<i64: 10, 7>}, {pipeline_mode = #tpu.pipeline_mode<synchronous>, transform_indices = @transform_3, window_bounds = array<i64: 10, 1>}, {pipeline_mode = #tpu.pipeline_mode<synchronous>, transform_indices = @transform_4, window_bounds = array<i64: 10, 1>}]} {
    %c0_i32 = arith.constant 0 : i32
    %0 = arith.cmpi eq, %arg0, %c0_i32 : i32
    %1 = arith.extui %0 : i1 to i32
    %c0_i32_0 = arith.constant 0 : i32
    %2 = arith.cmpi ne, %1, %c0_i32_0 : i32
    scf.if %2 {
      %cst_22 = arith.constant 0.000000e+00 : f32
      %30 = vector.broadcast %cst_22 : f32 to vector<7x1xf32>
      %c0_23 = arith.constant 0 : index
      %c0_24 = arith.constant 0 : index
      %31 = vector.load %arg6[%c0_23, %c0_24] : memref<7x1xf32, #tpu.memory_space<vmem>>, vector<7x1xf32>
      tpu.vector_store %arg6[%c0_23, %c0_24], %30 {strides = array<i32>} : memref<7x1xf32, #tpu.memory_space<vmem>>, vector<7x1xf32>,
    } else {
    }
    %c0 = arith.constant 0 : index
    %c0_1 = arith.constant 0 : index
    %c0_2 = arith.constant 0 : index
    %3 = vector.load %arg1[%c0, %c0_1, %c0_2] : memref<2x3x256xf32, #tpu.memory_space<vmem>>, vector<1x3x256xf32>
    %4 = vector.shape_cast %3 : vector<1x3x256xf32> to vector<3x256xf32>
    %cst = arith.constant dense<0.000000e+00> : vector<3xf32>
    %5 = vector.multi_reduction <add>, %4, %cst [1] : vector<3x256xf32> to vector<3xf32>
    %6 = vector.shape_cast %5 : vector<3xf32> to vector<3x1xf32>
    %c0_3 = arith.constant 0 : index
    %c0_4 = arith.constant 0 : index
    %c0_5 = arith.constant 0 : index
    %7 = vector.load %arg2[%c0_3, %c0_4, %c0_5] : memref<2x4x256xf32, #tpu.memory_space<vmem>>, vector<1x4x256xf32>
    %8 = vector.shape_cast %7 : vector<1x4x256xf32> to vector<4x256xf32>
    %cst_6 = arith.constant dense<0.000000e+00> : vector<4xf32>
    %9 = vector.multi_reduction <add>, %8, %cst_6 [1] : vector<4x256xf32> to vector<4xf32>
    %10 = vector.shape_cast %9 : vector<4xf32> to vector<4x1xf32>
    %c1 = arith.constant 1 : index
    %c0_7 = arith.constant 0 : index
    %c0_8 = arith.constant 0 : index
    %11 = vector.load %arg1[%c1, %c0_7, %c0_8] : memref<2x3x256xf32, #tpu.memory_space<vmem>>, vector<1x3x256xf32>
    %12 = vector.shape_cast %11 : vector<1x3x256xf32> to vector<3x256xf32>
    %cst_9 = arith.constant dense<0.000000e+00> : vector<3xf32>
    %13 = vector.multi_reduction <add>, %12, %cst_9 [1] : vector<3x256xf32> to vector<3xf32>
    %14 = vector.shape_cast %13 : vector<3xf32> to vector<3x1xf32>
    %15 = arith.addf %6, %14 : vector<3x1xf32>
    %c1_10 = arith.constant 1 : index
    %c0_11 = arith.constant 0 : index
    %c0_12 = arith.constant 0 : index
    %16 = vector.load %arg2[%c1_10, %c0_11, %c0_12] : memref<2x4x256xf32, #tpu.memory_space<vmem>>, vector<1x4x256xf32>
    %17 = vector.shape_cast %16 : vector<1x4x256xf32> to vector<4x256xf32>
    %cst_13 = arith.constant dense<0.000000e+00> : vector<4xf32>
    %18 = vector.multi_reduction <add>, %17, %cst_13 [1] : vector<4x256xf32> to vector<4xf32>
    %19 = vector.shape_cast %18 : vector<4xf32> to vector<4x1xf32>
    %20 = arith.addf %10, %19 : vector<4x1xf32>
    %c0_14 = arith.constant 0 : index
    %c0_15 = arith.constant 0 : index
    %21 = vector.load %arg6[%c0_14, %c0_15] : memref<7x1xf32, #tpu.memory_space<vmem>>, vector<3x1xf32>
    %22 = arith.addf %21, %15 : vector<3x1xf32>
    %c0_16 = arith.constant 0 : index
    %c0_17 = arith.constant 0 : index
    %23 = vector.load %arg6[%c0_16, %c0_17] : memref<7x1xf32, #tpu.memory_space<vmem>>, vector<3x1xf32>
    tpu.vector_store %arg6[%c0_16, %c0_17], %22 {strides = array<i32>} : memref<7x1xf32, #tpu.memory_space<vmem>>, vector<3x1xf32>,
    %c3 = arith.constant 3 : index
    %c0_18 = arith.constant 0 : index
    %24 = vector.load %arg6[%c3, %c0_18] : memref<7x1xf32, #tpu.memory_space<vmem>>, vector<4x1xf32>
    %25 = arith.addf %24, %20 : vector<4x1xf32>
    %c3_19 = arith.constant 3 : index
    %c0_20 = arith.constant 0 : index
    %26 = vector.load %arg6[%c3_19, %c0_20] : memref<7x1xf32, #tpu.memory_space<vmem>>, vector<4x1xf32>
    tpu.vector_store %arg6[%c3_19, %c0_20], %25 {strides = array<i32>} : memref<7x1xf32, #tpu.memory_space<vmem>>, vector<4x1xf32>,
    %c2_i32 = arith.constant 2 : i32
    %27 = arith.cmpi eq, %arg0, %c2_i32 : i32
    %28 = arith.extui %27 : i1 to i32
    %c0_i32_21 = arith.constant 0 : i32
    %29 = arith.cmpi ne, %28, %c0_i32_21 : i32
    scf.if %29 {
      %c0_22 = arith.constant 0 : index
      %c0_23 = arith.constant 0 : index
      %30 = vector.load %arg3[%c0_22, %c0_23] : memref<10x7xf32, #tpu.memory_space<vmem>>, vector<10x7xf32>
      %c0_24 = arith.constant 0 : index
      %c0_25 = arith.constant 0 : index
      %31 = vector.load %arg6[%c0_24, %c0_25] : memref<7x1xf32, #tpu.memory_space<vmem>>, vector<7x1xf32>
      %cst_26 = arith.constant dense<0.000000e+00> : vector<10x1xf32>
      %32 = tpu.matmul %30, %31, %cst_26 {dimension_numbers = #tpu.dot_dimension_numbers<[1], [0], [0], [1], [0, 0, 1, 1], [], []>} : vector<10x7xf32>, vector<7x1xf32>, vector<10x1xf32> -> vector<10x1xf32>
      %c0_27 = arith.constant 0 : index
      %c0_28 = arith.constant 0 : index
      %33 = vector.load %arg4[%c0_27, %c0_28] : memref<10x1xf32, #tpu.memory_space<vmem>>, vector<10x1xf32>
      %34 = arith.addf %32, %33 : vector<10x1xf32>
      %c0_29 = arith.constant 0 : index
      %c0_30 = arith.constant 0 : index
      %35 = vector.load %arg5[%c0_29, %c0_30] : memref<10x1xf32, #tpu.memory_space<vmem>>, vector<10x1xf32>
      tpu.vector_store %arg5[%c0_29, %c0_30], %34 {strides = array<i32>} : memref<10x1xf32, #tpu.memory_space<vmem>>, vector<10x1xf32>,
    } else {
    }
    return
  }
  func.func @transform_0(%arg0: i32) -> (i32, i32, i32) {
    %c0_i32 = arith.constant 0 : i32
    %c0_i32_0 = arith.constant 0 : i32
    %c0_i32_1 = arith.constant 0 : i32
    return %arg0, %c0_i32, %c0_i32_0 : i32, i32, i32
  }
  func.func @transform_1(%arg0: i32) -> (i32, i32, i32) {
    %c0_i32 = arith.constant 0 : i32
    %c0_i32_0 = arith.constant 0 : i32
    %c0_i32_1 = arith.constant 0 : i32
    return %arg0, %c0_i32, %c0_i32_0 : i32, i32, i32
  }
  func.func @transform_2(%arg0: i32) -> (i32, i32) {
    %c0_i32 = arith.constant 0 : i32
    %c0_i32_0 = arith.constant 0 : i32
    %c0_i32_1 = arith.constant 0 : i32
    return %c0_i32, %c0_i32_0 : i32, i32
  }
  func.func @transform_3(%arg0: i32) -> (i32, i32) {
    %c0_i32 = arith.constant 0 : i32
    %c0_i32_0 = arith.constant 0 : i32
    %c0_i32_1 = arith.constant 0 : i32
    return %c0_i32, %c0_i32_0 : i32, i32
  }
  func.func @transform_4(%arg0: i32) -> (i32, i32) {
    %c0_i32 = arith.constant 0 : i32
    %c0_i32_0 = arith.constant 0 : i32
    %c0_i32_1 = arith.constant 0 : i32
    return %c0_i32, %c0_i32_0 : i32, i32
  }
}

</mosaic_0001>

<llo_original>
// kernel: tpu_custom_call.1
$region0: #{tpu_custom_call.1}
  #allocation0 [shape = 'u32[]', space=smem, size = 0x4, offset = 0x4, fixed_abs, tag = 'smem constant byte address 0x4 - core index']
  #allocation1 [shape = 'u32[72,128]{1,0:T(1,128)}', space=vmem, size = 0x9000, scoped, tag = 'internal scratch']
  #allocation2 [shape = 'f32[7,1]{1,0:T(8,128)}', space=vmem, size = 0x1000, scoped, tag = 'scratch operand']
  %s0 = inlined_call_operand.hbm [shape: f32[6,3,256], index: 0, kind: input, shape index: {}]
  %s1 = inlined_call_operand.hbm [shape: f32[6,4,256], index: 1, kind: input, shape index: {}]
  %s2 = inlined_call_operand.vmem [shape: f32[10,7], index: 2, kind: input, shape index: {}]
  %s3 = inlined_call_operand.vmem [shape: f32[10,1], index: 3, kind: input, shape index: {}]
  %s4 = inlined_call_operand.vmem [shape: f32[10,1], index: 4, kind: output, shape index: {}]
  %s5 = sld [smem:[#allocation0]]
  $region65: #{tpu_custom_call.1} parent=0
    _
  %s7 = ssub.s32 1, %s5
  %s8 = scalar_select 0, %s7, %s5
  $region1: #{tpu_custom_call.1} parent=0
    #allocation3 [shape = 'u8[16384]{0}', space=vmem, size = 0x4000, scoped, tag = 'input window, operand 0']
    #allocation4 [shape = 's32[2]{0}', space=sflag, size = 0x8, scoped, tag = 'scoped memory for tpu_custom_call.1']
    #allocation5 [shape = 'u8[16384]{0}', space=vmem, size = 0x4000, scoped, tag = 'input window, operand 1']
    #allocation6 [shape = 's32[2]{0}', space=sflag, size = 0x8, scoped, tag = 'scoped memory for tpu_custom_call.1']
    %9 = vsyncpa [#allocation4], 0
    %s10 = scalar_lea.sflag [#allocation4], 1
    %11 = vsyncpa %s10, 0
    %12 = vsyncpa [#allocation6], 0
    %s13 = scalar_lea.sflag [#allocation6], 1
    %14 = vsyncpa %s13, 0
    loop: start=0, step=1, limit=5
    $region2: #{tpu_custom_call.1} parent=1 // loop_pre_header
      _
    $region3: #{tpu_custom_call.1} parent=1 // loop_header
      %s16 = sphi 0, %s20
      %p17 = scmp.ge.s32.totalorder %s16, 5
      %s26 = sphi 0, %s28
      %s29 = sphi 0, %s26
      %s30 = sphi 0, %s29
      %s46 = sphi 0, %s30
      %s52 = sphi 0, %s54
      %s55 = sphi 0, %s52
      %s56 = sphi 0, %s55
      %s72 = sphi 0, %s56
      %s76 = sphi 0, %s76
      %s78 = sphi 0, %s76
      %s79 = sphi 0, %s78
      %s93 = sphi 0, %s79
      %s97 = sphi 0, %s97
      %s99 = sphi 0, %s97
      %s100 = sphi 0, %s99
      %s114 = sphi 0, %s100
      %s118 = sphi 0, %s118
      %s120 = sphi 0, %s118
      %s121 = sphi 0, %s120
      %s135 = sphi 0, %s121
    $region4: #{tpu_custom_call.1} parent=1 // loop_header_branch
      %19 = sbr.rel (%p17) target = $region8
    $region5: #{tpu_custom_call.1} parent=1 // loop_body
      %s21 = ssub.s32 %s16, 1
      %s22 = ssub.s32 %s16, 2
      %s23 = sadd.s32 %s16, 1
      %s24 = ssub.s32 %s16, %s23
      %p25 = scmp.eq.s32.totalorder %s24, 0
      %s27 = sadd.s32 %s26, 1
      %s28 = scalar_select %p25, %s26, %s27
      %p31 = pneg %p25
      %p32 = scmp.eq.s32.totalorder %s16, 2
      %p33 = por %p31, %p32
      %p34 = scmp.ne.s32.totalorder %s26, %s29
      %p35 = scmp.eq.s32.totalorder %s16, 0
      %p36 = por %p34, %p35
      %p37 = scmp.ne.s32.totalorder %s26, %s29
      %p38 = scmp.eq.s32.totalorder %s21, 2
      %p39 = por %p37, %p38
      %p40 = scmp.ne.s32.totalorder %s29, %s30
      %p41 = scmp.eq.s32.totalorder %s21, 0
      %p42 = por %p40, %p41
      %p43 = scmp.ne.s32.totalorder %s29, %s30
      %p44 = scmp.eq.s32.totalorder %s22, 2
      %p45 = por %p43, %p44
      %p47 = scmp.ne.s32.totalorder %s30, %s46
      %p48 = scmp.eq.s32.totalorder %s22, 0
      %p49 = por %p47, %p48
      %s50 = ssub.s32 %s16, %s23
      %p51 = scmp.eq.s32.totalorder %s50, 0
      %s53 = sadd.s32 %s52, 1
      %s54 = scalar_select %p51, %s52, %s53
      %p57 = pneg %p51
      %p58 = scmp.eq.s32.totalorder %s16, 2
      %p59 = por %p57, %p58
      %p60 = scmp.ne.s32.totalorder %s52, %s55
      %p61 = scmp.eq.s32.totalorder %s16, 0
      %p62 = por %p60, %p61
      %p63 = scmp.ne.s32.totalorder %s52, %s55
      %p64 = scmp.eq.s32.totalorder %s21, 2
      %p65 = por %p63, %p64
      %p66 = scmp.ne.s32.totalorder %s55, %s56
      %p67 = scmp.eq.s32.totalorder %s21, 0
      %p68 = por %p66, %p67
      %p69 = scmp.ne.s32.totalorder %s55, %s56
      %p70 = scmp.eq.s32.totalorder %s22, 2
      %p71 = por %p69, %p70
      %p73 = scmp.ne.s32.totalorder %s56, %s72
      %p74 = scmp.eq.s32.totalorder %s22, 0
      %p75 = por %p73, %p74
      %s77 = sadd.s32 %s76, 1
      %p80 = scmp.eq.s32.totalorder %s16, 2
      %p81 = scmp.ne.s32.totalorder %s76, %s78
      %p82 = scmp.eq.s32.totalorder %s16, 0
      %p83 = por %p81, %p82
      %p84 = scmp.ne.s32.totalorder %s76, %s78
      %p85 = scmp.eq.s32.totalorder %s21, 2
      %p86 = por %p84, %p85
      %p87 = scmp.ne.s32.totalorder %s78, %s79
      %p88 = scmp.eq.s32.totalorder %s21, 0
      %p89 = por %p87, %p88
      %p90 = scmp.ne.s32.totalorder %s78, %s79
      %p91 = scmp.eq.s32.totalorder %s22, 2
      %p92 = por %p90, %p91
      %p94 = scmp.ne.s32.totalorder %s79, %s93
      %p95 = scmp.eq.s32.totalorder %s22, 0
      %p96 = por %p94, %p95
      %s98 = sadd.s32 %s97, 1
      %p101 = scmp.eq.s32.totalorder %s16, 2
      %p102 = scmp.ne.s32.totalorder %s97, %s99
      %p103 = scmp.eq.s32.totalorder %s16, 0
      %p104 = por %p102, %p103
      %p105 = scmp.ne.s32.totalorder %s97, %s99
      %p106 = scmp.eq.s32.totalorder %s21, 2
      %p107 = por %p105, %p106
      %p108 = scmp.ne.s32.totalorder %s99, %s100
      %p109 = scmp.eq.s32.totalorder %s21, 0
      %p110 = por %p108, %p109
      %p111 = scmp.ne.s32.totalorder %s99, %s100
      %p112 = scmp.eq.s32.totalorder %s22, 2
      %p113 = por %p111, %p112
      %p115 = scmp.ne.s32.totalorder %s100, %s114
      %p116 = scmp.eq.s32.totalorder %s22, 0
      %p117 = por %p115, %p116
      %s119 = sadd.s32 %s118, 1
      %p122 = scmp.eq.s32.totalorder %s16, 2
      %p123 = scmp.ne.s32.totalorder %s118, %s120
      %p124 = scmp.eq.s32.totalorder %s16, 0
      %p125 = por %p123, %p124
      %p126 = scmp.ne.s32.totalorder %s118, %s120
      %p127 = scmp.eq.s32.totalorder %s21, 2
      %p128 = por %p126, %p127
      %p129 = scmp.ne.s32.totalorder %s120, %s121
      %p130 = scmp.eq.s32.totalorder %s21, 0
      %p131 = por %p129, %p130
      %p132 = scmp.ne.s32.totalorder %s120, %s121
      %p133 = scmp.eq.s32.totalorder %s22, 2
      %p134 = por %p132, %p133
      %p136 = scmp.ne.s32.totalorder %s121, %s135
      %p137 = scmp.eq.s32.totalorder %s22, 0
      %p138 = por %p136, %p137
      %p139 = scmp.le.s32.totalorder 1, %s16
      %p140 = scmp.lt.s32.totalorder %s16, 4
      %p141 = pnand %p139, %p140
      %p142 = pneg %p141
      // Predicated region
      $region9: #{tpu_custom_call.1} parent=5 // pred_check
        _
      $region10: #{tpu_custom_call.1} parent=5 // pred_check_branch
        %144 = sbr.rel (%p141) target = $region12
      $region11: #{tpu_custom_call.1} parent=5 // pred_region
        %s145 = ssub.s32 %s16, 1
        // Predicated region
        $region13: #{tpu_custom_call.1} parent=11 // pred_check
          %p146 = pneg %p89
        $region14: #{tpu_custom_call.1} parent=11 // pred_check_branch
          %148 = sbr.rel (%p146) target = $region16
        $region15: #{tpu_custom_call.1} parent=11 // pred_region
          _
        $region16: #{tpu_custom_call.1} parent=11 // pred_fallthru
          _
        // Predicated region
        $region17: #{tpu_custom_call.1} parent=11 // pred_check
          %p149 = pneg %p110
        $region18: #{tpu_custom_call.1} parent=11 // pred_check_branch
          %151 = sbr.rel (%p149) target = $region20
        $region19: #{tpu_custom_call.1} parent=11 // pred_region
          _
        $region20: #{tpu_custom_call.1} parent=11 // pred_fallthru
          _
      $region12: #{tpu_custom_call.1} parent=5 // pred_fallthru
        _
      %p152 = scmp.lt.s32.totalorder %s16, 3
      // Predicated region
      $region21: #{tpu_custom_call.1} parent=5 // pred_check
        %p153 = pneg %p152
      $region22: #{tpu_custom_call.1} parent=5 // pred_check_branch
        %155 = sbr.rel (%p153) target = $region24
      $region23: #{tpu_custom_call.1} parent=5 // pred_region
        // Predicated region
        $region25: #{tpu_custom_call.1} parent=23 // pred_check
          %p156 = pneg %p36
        $region26: #{tpu_custom_call.1} parent=23 // pred_check_branch
          %158 = sbr.rel (%p156) target = $region28
        $region27: #{tpu_custom_call.1} parent=23 // pred_region
          %s159 = sand.u32 %s26, 1
          %s160 = scalar_lea.sflag [#allocation4], %s159
          %s161 = sand.u32 %s26, 1
          %s162 = smul.addr %s161, 16
          %s163 = scalar_lea.vmem [#allocation3], %s162
          %s164 = smul.u32 2, %s16
          %166 = vsyncadd %s160, 0
          %s167 = smul.addr %s164, 2
          %s168 = smul.addr %s167, 4
          %s169 = scalar_lea.hbm %s0, %s168
          %s170 = sshll.u32 %s169, 4
          %s171 = int_to_ptr.hbm [resolvable:$true] %s170
          %s172 = sshll.u32 %s163, 4
          %s173 = int_to_ptr.vmem [resolvable:$true] %s172
          %178 = dma.hbm_to_vmem [thread:$0]  %s171, 256, %s173, %s160, 128, 128, 8
        $region28: #{tpu_custom_call.1} parent=23 // pred_fallthru
          _
        // Predicated region
        $region29: #{tpu_custom_call.1} parent=23 // pred_check
          %p179 = pneg %p62
        $region30: #{tpu_custom_call.1} parent=23 // pred_check_branch
          %181 = sbr.rel (%p179) target = $region32
        $region31: #{tpu_custom_call.1} parent=23 // pred_region
          %s182 = sand.u32 %s52, 1
          %s183 = scalar_lea.sflag [#allocation6], %s182
          %s184 = sand.u32 %s52, 1
          %s185 = smul.addr %s184, 16
          %s186 = scalar_lea.vmem [#allocation5], %s185
          %s187 = smul.u32 2, %s16
          %189 = vsyncadd %s183, 0
          %s190 = smul.addr %s187, 2
          %s191 = smul.addr %s190, 4
          %s192 = scalar_lea.hbm %s1, %s191
          %s193 = sshll.u32 %s192, 4
          %s194 = int_to_ptr.hbm [resolvable:$true] %s193
          %s195 = sshll.u32 %s186, 4
          %s196 = int_to_ptr.vmem [resolvable:$true] %s195
          %201 = dma.hbm_to_vmem [thread:$0]  %s194, 256, %s196, %s183, 128, 128, 8
        $region32: #{tpu_custom_call.1} parent=23 // pred_fallthru
          _
      $region24: #{tpu_custom_call.1} parent=5 // pred_fallthru
        _
      %p202 = scmp.le.s32.totalorder 1, %s16
      %p203 = scmp.lt.s32.totalorder %s16, 4
      %p204 = pnand %p202, %p203
      %p205 = pneg %p204
      // Predicated region
      $region33: #{tpu_custom_call.1} parent=5 // pred_check
        _
      $region34: #{tpu_custom_call.1} parent=5 // pred_check_branch
        %207 = sbr.rel (%p204) target = $region36
      $region35: #{tpu_custom_call.1} parent=5 // pred_region
        %s208 = ssub.s32 %s16, 1
        %s209 = sand.u32 %s29, 1
        %s210 = scalar_lea.sflag [#allocation4], %s209
        %s211 = sand.u32 %s29, 1
        %s212 = smul.addr %s211, 16
        %s213 = scalar_lea.vmem [#allocation3], %s212
        // Predicated region
        $region37: #{tpu_custom_call.1} parent=35 // pred_check
          %p214 = pneg %p42
        $region38: #{tpu_custom_call.1} parent=35 // pred_check_branch
          %216 = sbr.rel (%p214) target = $region40
        $region39: #{tpu_custom_call.1} parent=35 // pred_region
          %218 = dma.done %s210, 256
        $region40: #{tpu_custom_call.1} parent=35 // pred_fallthru
          _
        %s219 = sand.u32 %s55, 1
        %s220 = scalar_lea.sflag [#allocation6], %s219
        %s221 = sand.u32 %s55, 1
        %s222 = smul.addr %s221, 16
        %s223 = scalar_lea.vmem [#allocation5], %s222
        // Predicated region
        $region41: #{tpu_custom_call.1} parent=35 // pred_check
          %p224 = pneg %p68
        $region42: #{tpu_custom_call.1} parent=35 // pred_check_branch
          %226 = sbr.rel (%p224) target = $region44
        $region43: #{tpu_custom_call.1} parent=35 // pred_region
          %228 = dma.done %s220, 256
        $region44: #{tpu_custom_call.1} parent=35 // pred_fallthru
          _
        %s229 = sand.u32 %s29, 1
        %s230 = scalar_lea.sflag [#allocation4], %s229
        %s231 = sand.u32 %s29, 1
        %s232 = smul.addr %s231, 16
        %s233 = scalar_lea.vmem [#allocation3], %s232
        %p234 = pneg %p42
        %p235 = pneg %p39
        %s236 = sand.u32 %s55, 1
        %s237 = scalar_lea.sflag [#allocation6], %s236
        %s238 = sand.u32 %s55, 1
        %s239 = smul.addr %s238, 16
        %s240 = scalar_lea.vmem [#allocation5], %s239
        %p241 = pneg %p68
        %p242 = pneg %p65
        %p243 = pneg %p89
        %p244 = pneg %p86
        %p245 = pneg %p110
        %p246 = pneg %p107
        %p247 = pneg %p131
        %p248 = pneg %p128
        %s249 = smul.u32 2, %s21
        %s250 = smul.u32 2, %s21
        %p251 = scmp.eq.s32.totalorder %s21, 0
        // Predicated region
        $region45: #{tpu_custom_call.1} parent=35 // pred_check
          %p252 = pneg %p251
        $region46: #{tpu_custom_call.1} parent=35 // pred_check_branch
          %254 = sbr.rel (%p252) target = $region48
        $region47: #{tpu_custom_call.1} parent=35 // pred_region
          %vm255 = vcmask 6144
          %256 = vst.msk [vmem:[#allocation2] sm:$0x7f] %vm255, 0.0
        $region48: #{tpu_custom_call.1} parent=35 // pred_fallthru
          _
        %v257 = vld [vmem:[%s213] sm:$0x77]
        %259 = vst [vmem:[#allocation1] ss:$2 sm:$0xff] %v257
        %v260 = vld.sshfl [vmem:[#allocation1] sm:$0xff pattern:$0x75316420]
        %v261 = vld.sshfl [vmem:[#allocation1 + $0x8] sm:$0xff pattern:$0x75316420]
        %vm264 = vcmask 1042432
        %v265 = vsel %vm264, %v260, 0.0
        %v266 = vsel %vm264, %v261, 0.0
        %v267 = vadd.f32 %v265, %v266
        %268 = vadd.xlane.f32.xlu0 %v267
        %v269 = vpop.xlane.xlu0 %268
        %v270 = vld [vmem:[%s223] sm:$0xff]
        %272 = vst [vmem:[#allocation1] ss:$2 sm:$0xff] %v270
        %v273 = vld.sshfl [vmem:[#allocation1] sm:$0xff pattern:$0x75316420]
        %v274 = vld.sshfl [vmem:[#allocation1 + $0x8] sm:$0xff pattern:$0x75316420]
        %vm277 = vcmask 1043456
        %v278 = vsel %vm277, %v273, 0.0
        %v279 = vsel %vm277, %v274, 0.0
        %v280 = vadd.f32 %v278, %v279
        %281 = vadd.xlane.f32.xlu0 %v280
        %v282 = vpop.xlane.xlu0 %281
        %s283 = scalar_lea.vmem %s213, 8 [#allocation3]
        %v284 = vld [vmem:[%s283] sm:$0x77]
        %286 = vst [vmem:[#allocation1] ss:$2 sm:$0xff] %v284
        %v287 = vld.sshfl [vmem:[#allocation1] sm:$0xff pattern:$0x75316420]
        %v288 = vld.sshfl [vmem:[#allocation1 + $0x8] sm:$0xff pattern:$0x75316420]
        %v291 = vsel %vm264, %v287, 0.0
        %v292 = vsel %vm264, %v288, 0.0
        %v293 = vadd.f32 %v291, %v292
        %294 = vadd.xlane.f32.xlu0 %v293
        %v295 = vpop.xlane.xlu0 %294
        %v296 = vadd.f32 %v269, %v295
        %s297 = scalar_lea.vmem %s223, 8 [#allocation5]
        %v298 = vld [vmem:[%s297] sm:$0xff]
        %300 = vst [vmem:[#allocation1] ss:$2 sm:$0xff] %v298
        %v301 = vld.sshfl [vmem:[#allocation1] sm:$0xff pattern:$0x75316420]
        %v302 = vld.sshfl [vmem:[#allocation1 + $0x8] sm:$0xff pattern:$0x75316420]
        %v305 = vsel %vm277, %v301, 0.0
        %v306 = vsel %vm277, %v302, 0.0
        %v307 = vadd.f32 %v305, %v306
        %308 = vadd.xlane.f32.xlu0 %v307
        %v309 = vpop.xlane.xlu0 %308
        %v310 = vadd.f32 %v282, %v309
        %v311 = vld [vmem:[#allocation2] sm:$0x7]
        %v312 = vadd.f32 %v311, %v296
        %vm313 = vcmask 2048
        %314 = vst.msk [vmem:[#allocation2] sm:$0x7] %vm313, %v312
        %v315 = vld [vmem:[#allocation2 + $0x3] sm:$0xf]
        %v316 = vadd.f32 %v315, %v310
        %vm317 = vcmask 3072
        %318 = vst.msk [vmem:[#allocation2 + $0x3] sm:$0xf] %vm317, %v316
        %p319 = scmp.eq.s32.totalorder %s21, 2
        // Predicated region
        $region49: #{tpu_custom_call.1} parent=35 // pred_check
          %p320 = pneg %p319
        $region50: #{tpu_custom_call.1} parent=35 // pred_check_branch
          %322 = sbr.rel (%p320) target = $region52
        $region51: #{tpu_custom_call.1} parent=35 // pred_region
          %v323 = vld [vmem:[%s2] sm:$0xff]
          %v324 = vld [vmem:[%s2 + $0x8] sm:$0x3]
          %v325 = vld [vmem:[#allocation2] sm:$0x7f]
          %v326 = vld [vmem:[%s3] sm:$0xff]
          %v327 = vld [vmem:[%s3 + $0x8] sm:$0x3]
          %vm328 = vcmask 56320
          %v330 = vsel %vm328, %v323, 0
          %v333 = vsel %vm328, %v324, 0
          %vm335 = vcmask 1046528
          %v337 = vsel %vm335, %v325, 0
          %339 = vmatpush.msra.mxu0 0.0
          %340 = vmatpush.msra.mxu0 0.0
          %341 = vmatpush.msra.mxu0 0.0
          %342 = vmatpush.msra.mxu0 0.0
          %343 = vmatpush.msra.mxu0 0.0
          %344 = vmatpush.msra.mxu0 0.0
          %345 = vmatpush.msra.mxu0 0.0
          %346 = vmatpush.msra.mxu0 0.0
          %347 = vmatpush.msra.mxu0 0.0
          %348 = vmatpush.msra.mxu0 0.0
          %349 = vmatpush.msra.mxu0 0.0
          %350 = vmatpush.msra.mxu0 0.0
          %351 = vmatpush.msra.mxu0 0.0
          %352 = vmatpush.msra.mxu0 0.0
          %353 = vmatpush.msra.mxu0 0.0
          %354 = vmatpush.msra.mxu0 %v337
          %355 = vmatmul.f32.gmra.mxu0 %v330
          %v356 = vpop.f32.mrf.mxu0
          %v357 = vadd.f32 %v326, %v356
          %358 = vmatmul.f32.gmra.mxu0 %v333
          %v359 = vpop.f32.mrf.mxu0
          %v360 = vadd.f32 %v327, %v359
          %361 = vdwg.mxu0
          %vm362 = vcmask 7168
          %363 = vst.msk [vmem:[%s4] sm:$0xff] %vm362, %v357
          %vm364 = vcmask 1024
          %365 = vst.msk [vmem:[%s4 + $0x8] sm:$0x3] %vm364, %v360
        $region52: #{tpu_custom_call.1} parent=35 // pred_fallthru
          _
        // Predicated region
        $region53: #{tpu_custom_call.1} parent=35 // pred_check
          %p366 = pneg %p128
        $region54: #{tpu_custom_call.1} parent=35 // pred_check_branch
          %368 = sbr.rel (%p366) target = $region56
        $region55: #{tpu_custom_call.1} parent=35 // pred_region
          _
        $region56: #{tpu_custom_call.1} parent=35 // pred_fallthru
          _
        // Predicated region
        $region57: #{tpu_custom_call.1} parent=35 // pred_check
          %p369 = pneg %p128
        $region58: #{tpu_custom_call.1} parent=35 // pred_check_branch
          %371 = sbr.rel (%p369) target = $region60
        $region59: #{tpu_custom_call.1} parent=35 // pred_region
          _
        $region60: #{tpu_custom_call.1} parent=35 // pred_fallthru
          _
      $region36: #{tpu_custom_call.1} parent=5 // pred_fallthru
        _
      %p372 = scmp.le.s32.totalorder 2, %s16
      // Predicated region
      $region61: #{tpu_custom_call.1} parent=5 // pred_check
        %p373 = pneg %p372
      $region62: #{tpu_custom_call.1} parent=5 // pred_check_branch
        %375 = sbr.rel (%p373) target = $region64
      $region63: #{tpu_custom_call.1} parent=5 // pred_region
        %s376 = ssub.s32 %s16, 2
      $region64: #{tpu_custom_call.1} parent=5 // pred_fallthru
        _
    $region6: #{tpu_custom_call.1} parent=1 // loop_footer
      %s20 = sadd.s32 1, %s16
    $region7: #{tpu_custom_call.1} parent=1 // loop_footer_branch
      %15 = sbr.rel target = $region3
    $region8: #{tpu_custom_call.1} parent=1 // loop_exit
      _
    %377 = vsyncpa [#allocation4], 1
    %s378 = scalar_lea.sflag [#allocation4], 1
    %379 = vsyncpa %s378, 1
    %380 = vsyncpa [#allocation6], 1
    %s381 = scalar_lea.sflag [#allocation6], 1
    %382 = vsyncpa %s381, 1

</llo_original>
